<compile_context>
chip_gen: v5e
topology: v5e:2x2
jax: 0.10.0
libtpu: 0.0.40
codegen_flags: <defaults>
</compile_context>

<pallas_src>
import math
import functools

import jax
import jax.numpy as jnp
from jax.experimental import pallas as pl
from jax.experimental.pallas import tpu as pltpu


def _layernorm(x, g, b, eps=1e-6):
    mu = jnp.mean(x, axis=-1, keepdims=True)
    var = jnp.mean((x - mu) ** 2, axis=-1, keepdims=True)
    return (x - mu) * jax.lax.rsqrt(var + eps) * g + b


def _pick_tile(n, preferred, floor):
    """Largest multiple of `floor` that is <= preferred and divides n, else n."""
    t = min(preferred, n)
    while t >= floor:
        if n % t == 0 and t % floor == 0:
            return t
        t -= floor
    return n


# --------------------------------------------------------------------------
# Kernel 1: LN1 + fused QKV projection (rows tiled, one wide (D,3D) matmul)
# --------------------------------------------------------------------------
def ln_qkv_kernel(x_ref, g_ref, b_ref, w_ref, bias_ref, q_ref, k_ref, v_ref):
    D = q_ref.shape[-1]
    x = x_ref[0].astype(jnp.float32)                          # (TR, D)
    xn = _layernorm(x, g_ref[...].astype(jnp.float32),
                    b_ref[...].astype(jnp.float32))
    qkv = jnp.dot(xn.astype(w_ref.dtype), w_ref[...],
                  preferred_element_type=jnp.float32)          # (TR, 3D)
    qkv = qkv + bias_ref[...].astype(jnp.float32)
    q_ref[0] = qkv[:, :D].astype(q_ref.dtype)
    k_ref[0] = qkv[:, D:2 * D].astype(k_ref.dtype)
    v_ref[0] = qkv[:, 2 * D:].astype(v_ref.dtype)


# --------------------------------------------------------------------------
# Kernel 2: flash attention (online softmax over KV tiles) + Wo + residual
# --------------------------------------------------------------------------
def flash_attn_kernel(x_ref, q_ref, k_ref, v_ref, wo_ref, bo_ref, o_ref,
                      q_s, m_s, l_s, acc_s, *, num_heads):
    TQ, D = q_ref.shape[1], q_ref.shape[2]
    TK = k_ref.shape[1]
    hd = D // num_heads
    scale = 1.0 / math.sqrt(hd)

    qi = pl.program_id(1)
    ki = pl.program_id(2)
    nk = pl.num_programs(2)

    @pl.when(ki == 0)
    def _init():
        q = q_ref[0].astype(jnp.float32)                       # (TQ, D)
        # head-major layout + 1/sqrt(hd) scaling once per q tile
        # (no per-head slicing and no logits-scale multiply in the kv loop).
        q_s[...] = jnp.swapaxes(q.reshape(TQ, num_heads, hd), 0, 1) * scale
        m_s[...] = jnp.full_like(m_s, -jnp.inf)
        l_s[...] = jnp.zeros_like(l_s)
        acc_s[...] = jnp.zeros_like(acc_s)

    # Skip KV tiles that are entirely in the causal future.  (Their HBM
    # fetches are also skipped via the clamped index maps in the wrapper.)
    @pl.when(ki * TK <= qi * TQ + (TQ - 1))
    def _step():
        k = k_ref[0]
        v = v_ref[0]
        kh = jnp.swapaxes(k.reshape(TK, num_heads, hd), 0, 1)  # (H, TK, hd)
        vh = jnp.swapaxes(v.reshape(TK, num_heads, hd), 0, 1)  # (H, TK, hd)

        s = jnp.einsum("hqd,hkd->hqk", q_s[...].astype(kh.dtype), kh,
                       preferred_element_type=jnp.float32)     # (H, TQ, TK)

        # Per-tile causal mask (no (S,S) iota); masked logits stay f32.
        row = jax.lax.broadcasted_iota(jnp.int32, (TQ, TK), 0) + qi * TQ
        col = jax.lax.broadcasted_iota(jnp.int32, (TQ, TK), 1) + ki * TK
        s = jnp.where((col <= row)[None, :, :], s, -10000.0)

        m_new = jnp.maximum(m_s[...], s.max(axis=-1, keepdims=True))
        alpha = jnp.exp(m_s[...] - m_new)
        p = jnp.exp(s - m_new)
        l_s[...] = alpha * l_s[...] + p.sum(axis=-1, keepdims=True)
        acc_s[...] = alpha * acc_s[...] + jnp.einsum(
            "hqk,hkd->hqd", p.astype(vh.dtype), vh,
            preferred_element_type=jnp.float32)
        m_s[...] = m_new

    @pl.when(ki == nk - 1)
    def _finalize():
        ctx = acc_s[...] * pl.reciprocal(l_s[...], approx=True)       # (H,TQ,hd)
        ctx = jnp.swapaxes(ctx, 0, 1).reshape(TQ, D)                   # (TQ, D)
        out = jnp.dot(ctx.astype(wo_ref.dtype), wo_ref[...],
                      preferred_element_type=jnp.float32)
        out = out + bo_ref[...].astype(jnp.float32)
        o_ref[0] = (x_ref[0].astype(jnp.float32) + out).astype(o_ref.dtype)


# --------------------------------------------------------------------------
# Kernel 3: LN2 + MLP with FFN dimension streamed over a grid axis + residual
# --------------------------------------------------------------------------
def ln_mlp_kernel(x_ref, g_ref, b_ref, w1_ref, b1_ref, w2_ref, b2_ref, o_ref,
                  xn_s, acc_s):
    fi = pl.program_id(2)
    nf = pl.num_programs(2)

    @pl.when(fi == 0)
    def _init():
        x = x_ref[0].astype(jnp.float32)
        xn_s[...] = _layernorm(x, g_ref[...].astype(jnp.float32),
                               b_ref[...].astype(jnp.float32))
        acc_s[...] = jnp.zeros_like(acc_s)

    h = jnp.dot(xn_s[...].astype(w1_ref.dtype), w1_ref[...],
                preferred_element_type=jnp.float32)
    h = h + b1_ref[...].astype(jnp.float32)
    h = jax.nn.gelu(h, approximate=False)          # exact erf-gelu like F.gelu
    acc_s[...] += jnp.dot(h.astype(w2_ref.dtype), w2_ref[...],
                          preferred_element_type=jnp.float32)

    @pl.when(fi == nf - 1)
    def _finalize():
        o_ref[0] = (x_ref[0].astype(jnp.float32) + acc_s[...]
                    + b2_ref[...].astype(jnp.float32)).astype(o_ref.dtype)


# --------------------------------------------------------------------------
# Wrapper
# --------------------------------------------------------------------------
def gpt_layer(x, params, num_heads, *,
              q_tile=128, kv_tile=128, row_tile=128, f_tile=512):
    B, S, D = x.shape
    F = params["w1"].shape[1]
    hd = D // num_heads
    isz = x.dtype.itemsize

    TQ = _pick_tile(S, q_tile, 8)
    TK = _pick_tile(S, kv_tile, 8)
    TR = _pick_tile(S, row_tile, 8)
    TF = _pick_tile(F, f_tile, 128)
    n_q, n_kv, n_r, n_f = S // TQ, S // TK, S // TR, F // TF

    # Safe on v5e/v6e/v7x; actual per-kernel VMEM usage is far below this.
    vmem_cap = 32 * 1024 * 1024

    # Fused QKV weights (one wide matmul instead of three short MXU pushes).
    wqkv = jnp.concatenate([params["wq"], params["wk"], params["wv"]], axis=1)
    bqkv = jnp.concatenate([params["bq"], params["bk"], params["bv"]], axis=1)

    # ---- kernel 1: LN1 + QKV projection -----------------------------------
    ce1 = pl.CostEstimate(
        flops=2 * B * S * D * 3 * D, transcendentals=0,
        bytes_accessed=isz * (4 * B * S * D + 3 * D * D + 5 * D))
    row_spec = pl.BlockSpec((1, TR, D), lambda b, r: (b, r, 0))
    q, k, v = pl.pallas_call(
        ln_qkv_kernel,
        out_shape=(jax.ShapeDtypeStruct((B, S, D), x.dtype),) * 3,
        grid=(B, n_r),
        in_specs=[
            row_spec,
            pl.BlockSpec((1, D), lambda b, r: (0, 0)),       # ln1 gamma
            pl.BlockSpec((1, D), lambda b, r: (0, 0)),       # ln1 beta
            pl.BlockSpec((D, 3 * D), lambda b, r: (0, 0)),   # Wqkv (fused)
            pl.BlockSpec((1, 3 * D), lambda b, r: (0, 0)),   # bqkv
        ],
        out_specs=[row_spec, row_spec, row_spec],
        compiler_params=pltpu.CompilerParams(
            dimension_semantics=("parallel", "parallel"),
            vmem_limit_bytes=vmem_cap),
        cost_estimate=ce1,
    )(x, params["ln1_g"], params["ln1_b"], wqkv, bqkv)

    # ---- kernel 2: flash attention + output projection + residual ---------
    # K/V index maps are clamped to the last KV block the current Q block can
    # attend to; for fully-future KV tiles the block index repeats, so Pallas
    # never re-DMAs them (the in-kernel pl.when already skips their compute).
    def kv_index_map(b, i, j):
        limit = (i * TQ + (TQ - 1)) // TK
        return (b, jnp.minimum(j, limit), 0)

    ce2 = pl.CostEstimate(
        flops=4 * B * S * S * D + 2 * B * S * D * D,
        transcendentals=B * num_heads * S * S,
        bytes_accessed=isz * (5 * B * S * D + D * D + 2 * D))
    x1 = pl.pallas_call(
        functools.partial(flash_attn_kernel, num_heads=num_heads),
        out_shape=jax.ShapeDtypeStruct((B, S, D), x.dtype),
        grid=(B, n_q, n_kv),
        in_specs=[
            pl.BlockSpec((1, TQ, D), lambda b, i, j: (b, i, 0)),   # x (residual)
            pl.BlockSpec((1, TQ, D), lambda b, i, j: (b, i, 0)),   # Q tile
            pl.BlockSpec((1, TK, D), kv_index_map),                # K tile
            pl.BlockSpec((1, TK, D), kv_index_map),                # V tile
            pl.BlockSpec((D, D), lambda b, i, j: (0, 0)),          # Wo
            pl.BlockSpec((1, D), lambda b, i, j: (0, 0)),          # bo
        ],
        out_specs=pl.BlockSpec((1, TQ, D), lambda b, i, j: (b, i, 0)),
        scratch_shapes=[
            pltpu.VMEM((num_heads, TQ, hd), jnp.float32),   # Q (scaled, head-major)
            pltpu.VMEM((num_heads, TQ, 1), jnp.float32),    # running max
            pltpu.VMEM((num_heads, TQ, 1), jnp.float32),    # running denom
            pltpu.VMEM((num_heads, TQ, hd), jnp.float32),   # accumulator
        ],
        compiler_params=pltpu.CompilerParams(
            dimension_semantics=("parallel", "parallel", "arbitrary"),
            vmem_limit_bytes=vmem_cap),
        cost_estimate=ce2,
    )(x, q, k, v, params["wo"], params["bo"])

    # ---- kernel 3: LN2 + MLP (stream W1/W2 over FFN tiles) + residual ------
    ce3 = pl.CostEstimate(
        flops=4 * B * S * D * F, transcendentals=B * S * F,
        bytes_accessed=isz * (2 * B * S * D + 2 * D * F + F + 3 * D))
    out = pl.pallas_call(
        ln_mlp_kernel,
        out_shape=jax.ShapeDtypeStruct((B, S, D), x.dtype),
        grid=(B, n_r, n_f),
        in_specs=[
            pl.BlockSpec((1, TR, D), lambda b, r, f: (b, r, 0)),   # x1 (residual)
            pl.BlockSpec((1, D), lambda b, r, f: (0, 0)),          # ln2 gamma
            pl.BlockSpec((1, D), lambda b, r, f: (0, 0)),          # ln2 beta
            pl.BlockSpec((D, TF), lambda b, r, f: (0, f)),         # W1 tile
            pl.BlockSpec((1, TF), lambda b, r, f: (0, f)),         # b1 tile
            pl.BlockSpec((TF, D), lambda b, r, f: (f, 0)),         # W2 tile
            pl.BlockSpec((1, D), lambda b, r, f: (0, 0)),          # b2
        ],
        out_specs=pl.BlockSpec((1, TR, D), lambda b, r, f: (b, r, 0)),
        scratch_shapes=[
            pltpu.VMEM((TR, D), jnp.float32),   # LN2(x1) (computed once per row tile)
            pltpu.VMEM((TR, D), jnp.float32),   # MLP accumulator
        ],
        compiler_params=pltpu.CompilerParams(
            dimension_semantics=("parallel", "parallel", "arbitrary"),
            vmem_limit_bytes=vmem_cap),
        cost_estimate=ce3,
    )(x1, params["ln2_g"], params["ln2_b"],
      params["w1"], params["b1"], params["w2"], params["b2"])
    return out


# --------------------------------------------------------------------------
# Pure-JAX reference mirroring the PyTorch module
# --------------------------------------------------------------------------
def gpt_layer_ref(x, params, num_heads):
    def ln(x, g, b):
        mu = jnp.mean(x, -1, keepdims=True)
        var = jnp.mean((x - mu) ** 2, -1, keepdims=True)
        return (x - mu) / jnp.sqrt(var + 1e-6) * g + b

    B, S, D = x.shape
    hd = D // num_heads
    xn = ln(x, params["ln1_g"], params["ln1_b"])
    q = xn @ params["wq"] + params["bq"]
    k = xn @ params["wk"] + params["bk"]
    v = xn @ params["wv"] + params["bv"]
    q = q.reshape(B, S, num_heads, hd).transpose(0, 2, 1, 3)
    k = k.reshape(B, S, num_heads, hd).transpose(0, 2, 1, 3)
    v = v.reshape(B, S, num_heads, hd).transpose(0, 2, 1, 3)
    s = jnp.einsum("bhqd,bhkd->bhqk", q, k) / math.sqrt(hd)
    mask = jnp.tril(jnp.ones((S, S), dtype=bool))[None, None]
    s = jnp.where(mask, s, -10000.0)
    p = jax.nn.softmax(s, axis=-1)
    ctx = jnp.einsum("bhqk,bhkd->bhqd", p, v).transpose(0, 2, 1, 3).reshape(B, S, D)
    x1 = x + ctx @ params["wo"] + params["bo"]
    x1n = ln(x1, params["ln2_g"], params["ln2_b"])
    h1 = jax.nn.gelu(x1n @ params["w1"] + params["b1"], approximate=False)
    return x1 + h1 @ params["w2"] + params["b2"]


def init_params(key, dim, mlp_ratio=4, dtype=jnp.float32):
    ffn = dim * mlp_ratio
    ks = jax.random.split(key, 10)
    s = 0.02
    return {
        "ln1_g": jnp.ones((1, dim), dtype),
        "ln1_b": jnp.zeros((1, dim), dtype),
        "wq": s * jax.random.normal(ks[0], (dim, dim), dtype),
        "bq": s * jax.random.normal(ks[1], (1, dim), dtype),
        "wk": s * jax.random.normal(ks[2], (dim, dim), dtype),
        "bk": s * jax.random.normal(ks[3], (1, dim), dtype),
        "wv": s * jax.random.normal(ks[4], (dim, dim), dtype),
        "bv": s * jax.random.normal(ks[5], (1, dim), dtype),
        "wo": s * jax.random.normal(ks[6], (dim, dim), dtype),
        "bo": s * jax.random.normal(ks[7], (1, dim), dtype),
        "ln2_g": jnp.ones((1, dim), dtype),
        "ln2_b": jnp.zeros((1, dim), dtype),
        "w1": s * jax.random.normal(ks[8], (dim, ffn), dtype),
        "b1": jnp.zeros((1, ffn), dtype),
        "w2": s * jax.random.normal(ks[9], (ffn, dim), dtype),
        "b2": jnp.zeros((1, dim), dtype),
    }


if __name__ == "__main__":
    key = jax.random.PRNGKey(0)

    # Test 1: tiny shapes (single tile per axis).
    B, S, D, H = 2, 8, 32, 4
    kx, kp, key = jax.random.split(key, 3)
    x = jax.random.normal(kx, (B, S, D), jnp.float32)
    params = init_params(kp, D)
    out = jax.block_until_ready(gpt_layer(x, params, num_heads=H))
    ref = gpt_layer_ref(x, params, num_heads=H)
    assert out.shape == (B, S, D)
    assert jnp.allclose(out, ref, atol=2e-3, rtol=2e-3), (
        f"mismatch vs reference (small): {jnp.max(jnp.abs(out - ref))}")

    # Test 2: multi-tile shapes to exercise the online-softmax / causal DMA
    # clamping / FFN streaming paths.
    B, S, D, H = 1, 256, 128, 4
    kx, kp, key = jax.random.split(key, 3)
    x = jax.random.normal(kx, (B, S, D), jnp.float32)
    params = init_params(kp, D)
    out = jax.block_until_ready(
        gpt_layer(x, params, num_heads=H, q_tile=128, kv_tile=128,
                  row_tile=128, f_tile=256))
    ref = gpt_layer_ref(x, params, num_heads=H)
    assert out.shape == (B, S, D)
    assert jnp.allclose(out, ref, atol=2e-3, rtol=2e-3), (
        f"mismatch vs reference (tiled): {jnp.max(jnp.abs(out - ref))}")

    print("KERNEL_OK")
</pallas_src>

<mosaic_0001>
module attributes {stable_mosaic.version = 11 : i64} {
  func.func @ln_qkv_kernel(%arg0: i32, %arg1: i32, %arg2: memref<1x8x32xf32, #tpu.memory_space<vmem>>, %arg3: memref<1x32xf32, #tpu.memory_space<vmem>>, %arg4: memref<1x32xf32, #tpu.memory_space<vmem>>, %arg5: memref<32x96xf32, #tpu.memory_space<vmem>>, %arg6: memref<1x96xf32, #tpu.memory_space<vmem>>, %arg7: memref<1x8x32xf32, #tpu.memory_space<vmem>>, %arg8: memref<1x8x32xf32, #tpu.memory_space<vmem>>, %arg9: memref<1x8x32xf32, #tpu.memory_space<vmem>>) attributes {dimension_semantics = [#tpu.dimension_semantics<parallel>, #tpu.dimension_semantics<parallel>], iteration_bounds = array<i64: 2, 1>, scalar_prefetch = 0 : i64, scratch_operands = 0 : i64, tpu.core_type = #tpu.core_type<tc>, window_params = [{transform_indices = @transform_0, window_bounds = array<i64: 1, 8, 32>}, {pipeline_mode = #tpu.pipeline_mode<synchronous>, transform_indices = @transform_1, window_bounds = array<i64: 1, 32>}, {pipeline_mode = #tpu.pipeline_mode<synchronous>, transform_indices = @transform_2, window_bounds = array<i64: 1, 32>}, {pipeline_mode = #tpu.pipeline_mode<synchronous>, transform_indices = @transform_3, window_bounds = array<i64: 32, 96>}, {pipeline_mode = #tpu.pipeline_mode<synchronous>, transform_indices = @transform_4, window_bounds = array<i64: 1, 96>}, {transform_indices = @transform_5, window_bounds = array<i64: 1, 8, 32>}, {transform_indices = @transform_6, window_bounds = array<i64: 1, 8, 32>}, {transform_indices = @transform_7, window_bounds = array<i64: 1, 8, 32>}]} {
    %c0 = arith.constant 0 : index
    %c0_0 = arith.constant 0 : index
    %c0_1 = arith.constant 0 : index
    %0 = vector.load %arg2[%c0, %c0_0, %c0_1] : memref<1x8x32xf32, #tpu.memory_space<vmem>>, vector<1x8x32xf32>
    %1 = vector.shape_cast %0 : vector<1x8x32xf32> to vector<8x32xf32>
    %c0_2 = arith.constant 0 : index
    %c0_3 = arith.constant 0 : index
    %2 = vector.load %arg3[%c0_2, %c0_3] : memref<1x32xf32, #tpu.memory_space<vmem>>, vector<1x32xf32>
    %c0_4 = arith.constant 0 : index
    %c0_5 = arith.constant 0 : index
    %3 = vector.load %arg4[%c0_4, %c0_5] : memref<1x32xf32, #tpu.memory_space<vmem>>, vector<1x32xf32>
    %cst = arith.constant dense<0.000000e+00> : vector<8xf32>
    %4 = vector.multi_reduction <add>, %1, %cst [1] : vector<8x32xf32> to vector<8xf32>
    %5 = vector.shape_cast %4 : vector<8xf32> to vector<8x1xf32>
    %cst_6 = arith.constant 3.200000e+01 : f32
    %6 = vector.broadcast %cst_6 : f32 to vector<8x1xf32>
    %7 = arith.divf %5, %6 : vector<8x1xf32>
    %8 = vector.broadcast %7 : vector<8x1xf32> to vector<8x32xf32>
    %9 = arith.subf %1, %8 : vector<8x32xf32>
    %10 = arith.mulf %9, %9 : vector<8x32xf32>
    %cst_7 = arith.constant dense<0.000000e+00> : vector<8xf32>
    %11 = vector.multi_reduction <add>, %10, %cst_7 [1] : vector<8x32xf32> to vector<8xf32>
    %12 = vector.shape_cast %11 : vector<8xf32> to vector<8x1xf32>
    %cst_8 = arith.constant 3.200000e+01 : f32
    %13 = vector.broadcast %cst_8 : f32 to vector<8x1xf32>
    %14 = arith.divf %12, %13 : vector<8x1xf32>
    %15 = vector.broadcast %7 : vector<8x1xf32> to vector<8x32xf32>
    %16 = arith.subf %1, %15 : vector<8x32xf32>
    %cst_9 = arith.constant 9.99999997E-7 : f32
    %17 = vector.broadcast %cst_9 : f32 to vector<8x1xf32>
    %18 = arith.addf %14, %17 : vector<8x1xf32>
    %19 = math.rsqrt %18 : vector<8x1xf32>
    %20 = vector.broadcast %19 : vector<8x1xf32> to vector<8x32xf32>
    %21 = arith.mulf %16, %20 : vector<8x32xf32>
    %22 = vector.broadcast %2 : vector<1x32xf32> to vector<8x32xf32>
    %23 = arith.mulf %21, %22 : vector<8x32xf32>
    %24 = vector.broadcast %3 : vector<1x32xf32> to vector<8x32xf32>
    %25 = arith.addf %23, %24 : vector<8x32xf32>
    %c0_10 = arith.constant 0 : index
    %c0_11 = arith.constant 0 : index
    %26 = vector.load %arg5[%c0_10, %c0_11] : memref<32x96xf32, #tpu.memory_space<vmem>>, vector<32x96xf32>
    %cst_12 = arith.constant dense<0.000000e+00> : vector<8x96xf32>
    %27 = tpu.matmul %25, %26, %cst_12 {dimension_numbers = #tpu.dot_dimension_numbers<[1], [0], [0], [1], [0, 0, 1, 1], [], []>} : vector<8x32xf32>, vector<32x96xf32>, vector<8x96xf32> -> vector<8x96xf32>
    %c0_13 = arith.constant 0 : index
    %c0_14 = arith.constant 0 : index
    %28 = vector.load %arg6[%c0_13, %c0_14] : memref<1x96xf32, #tpu.memory_space<vmem>>, vector<1x96xf32>
    %29 = vector.broadcast %28 : vector<1x96xf32> to vector<8x96xf32>
    %30 = arith.addf %27, %29 : vector<8x96xf32>
    %31 = vector.extract_strided_slice %30 {offsets = [0, 0], sizes = [8, 32], strides = [1, 1]} : vector<8x96xf32> to vector<8x32xf32>
    %c0_15 = arith.constant 0 : index
    %c0_16 = arith.constant 0 : index
    %c0_17 = arith.constant 0 : index
    %32 = vector.load %arg7[%c0_15, %c0_16, %c0_17] : memref<1x8x32xf32, #tpu.memory_space<vmem>>, vector<1x8x32xf32>
    %33 = vector.shape_cast %32 : vector<1x8x32xf32> to vector<8x32xf32>
    %34 = vector.shape_cast %31 : vector<8x32xf32> to vector<1x8x32xf32>
    tpu.vector_store %arg7[%c0_15, %c0_16, %c0_17], %34 {strides = array<i32>} : memref<1x8x32xf32, #tpu.memory_space<vmem>>, vector<1x8x32xf32>,
    %35 = vector.extract_strided_slice %30 {offsets = [0, 32], sizes = [8, 32], strides = [1, 1]} : vector<8x96xf32> to vector<8x32xf32>
    %c0_18 = arith.constant 0 : index
    %c0_19 = arith.constant 0 : index
    %c0_20 = arith.constant 0 : index
    %36 = vector.load %arg8[%c0_18, %c0_19, %c0_20] : memref<1x8x32xf32, #tpu.memory_space<vmem>>, vector<1x8x32xf32>
    %37 = vector.shape_cast %36 : vector<1x8x32xf32> to vector<8x32xf32>
    %38 = vector.shape_cast %35 : vector<8x32xf32> to vector<1x8x32xf32>
    tpu.vector_store %arg8[%c0_18, %c0_19, %c0_20], %38 {strides = array<i32>} : memref<1x8x32xf32, #tpu.memory_space<vmem>>, vector<1x8x32xf32>,
    %39 = vector.extract_strided_slice %30 {offsets = [0, 64], sizes = [8, 32], strides = [1, 1]} : vector<8x96xf32> to vector<8x32xf32>
    %c0_21 = arith.constant 0 : index
    %c0_22 = arith.constant 0 : index
    %c0_23 = arith.constant 0 : index
    %40 = vector.load %arg9[%c0_21, %c0_22, %c0_23] : memref<1x8x32xf32, #tpu.memory_space<vmem>>, vector<1x8x32xf32>
    %41 = vector.shape_cast %40 : vector<1x8x32xf32> to vector<8x32xf32>
    %42 = vector.shape_cast %39 : vector<8x32xf32> to vector<1x8x32xf32>
    tpu.vector_store %arg9[%c0_21, %c0_22, %c0_23], %42 {strides = array<i32>} : memref<1x8x32xf32, #tpu.memory_space<vmem>>, vector<1x8x32xf32>,
    return
  }
  func.func @transform_0(%arg0: i32, %arg1: i32) -> (i32, i32, i32) {
    %c0_i32 = arith.constant 0 : i32
    %c0_i32_0 = arith.constant 0 : i32
    return %arg0, %arg1, %c0_i32 : i32, i32, i32
  }
  func.func @transform_1(%arg0: i32, %arg1: i32) -> (i32, i32) {
    %c0_i32 = arith.constant 0 : i32
    %c0_i32_0 = arith.constant 0 : i32
    %c0_i32_1 = arith.constant 0 : i32
    return %c0_i32, %c0_i32_0 : i32, i32
  }
  func.func @transform_2(%arg0: i32, %arg1: i32) -> (i32, i32) {
    %c0_i32 = arith.constant 0 : i32
    %c0_i32_0 = arith.constant 0 : i32
    %c0_i32_1 = arith.constant 0 : i32
    return %c0_i32, %c0_i32_0 : i32, i32
  }
  func.func @transform_3(%arg0: i32, %arg1: i32) -> (i32, i32) {
    %c0_i32 = arith.constant 0 : i32
    %c0_i32_0 = arith.constant 0 : i32
    %c0_i32_1 = arith.constant 0 : i32
    return %c0_i32, %c0_i32_0 : i32, i32
  }
  func.func @transform_4(%arg0: i32, %arg1: i32) -> (i32, i32) {
    %c0_i32 = arith.constant 0 : i32
    %c0_i32_0 = arith.constant 0 : i32
    %c0_i32_1 = arith.constant 0 : i32
    return %c0_i32, %c0_i32_0 : i32, i32
  }
  func.func @transform_5(%arg0: i32, %arg1: i32) -> (i32, i32, i32) {
    %c0_i32 = arith.constant 0 : i32
    %c0_i32_0 = arith.constant 0 : i32
    return %arg0, %arg1, %c0_i32 : i32, i32, i32
  }
  func.func @transform_6(%arg0: i32, %arg1: i32) -> (i32, i32, i32) {
    %c0_i32 = arith.constant 0 : i32
    %c0_i32_0 = arith.constant 0 : i32
    return %arg0, %arg1, %c0_i32 : i32, i32, i32
  }
  func.func @transform_7(%arg0: i32, %arg1: i32) -> (i32, i32, i32) {
    %c0_i32 = arith.constant 0 : i32
    %c0_i32_0 = arith.constant 0 : i32
    return %arg0, %arg1, %c0_i32 : i32, i32, i32
  }
}

</mosaic_0001>

<llo_original>
// kernel: tpu_custom_call.1
$region0: #{tpu_custom_call.1}
  #allocation0 [shape = 'u32[]', space=smem, size = 0x4, offset = 0x4, fixed_abs, tag = 'smem constant byte address 0x4 - core index']
  #allocation1 [shape = 'u32[72,128]{1,0:T(1,128)}', space=vmem, size = 0x9000, scoped, tag = 'internal scratch']
  %s0 = inlined_call_operand.hbm [shape: f32[2,8,32], index: 0, kind: input, shape index: {}]
  %s1 = inlined_call_operand.hbm [shape: f32[1,32], index: 1, kind: input, shape index: {}]
  %s2 = inlined_call_operand.vmem [shape: f32[1,32], index: 2, kind: input, shape index: {}]
  %s3 = inlined_call_operand.hbm [shape: f32[32,96], index: 3, kind: input, shape index: {}]
  %s4 = inlined_call_operand.vmem [shape: f32[1,96], index: 4, kind: input, shape index: {}]
  %s5 = inlined_call_operand.hbm [shape: f32[2,8,32], index: 5, kind: output, shape index: {0}]
  %s6 = inlined_call_operand.hbm [shape: f32[2,8,32], index: 6, kind: output, shape index: {1}]
  %s7 = inlined_call_operand.hbm [shape: f32[2,8,32], index: 7, kind: output, shape index: {2}]
  %8 = xla_tuple %s5, %s6, %s7
  %s9 = sld [smem:[#allocation0]]
  $region81: #{tpu_custom_call.1} parent=0
    _
  %s11 = ssub.s32 1, %s9
  %s12 = scalar_select 0, %s11, %s9
  $region1: #{tpu_custom_call.1} parent=0
    #allocation2 [shape = 'u8[8192]{0}', space=vmem, size = 0x2000, scoped, tag = 'input window, operand 0']
    #allocation3 [shape = 's32[2]{0}', space=sflag, size = 0x8, scoped, tag = 'scoped memory for tpu_custom_call.1']
    #allocation4 [shape = 's32[2]{0}', space=sflag, size = 0x8, scoped, tag = 'scoped memory for tpu_custom_call.1']
    #allocation5 [shape = 'u8[512]{0}', space=vmem, size = 0x400, scoped, tag = 'input window, operand 1, single buffered']
    #allocation6 [shape = 's32[1]{0}', space=sflag, size = 0x4, scoped, tag = 'scoped memory for tpu_custom_call.1']
    #allocation7 [shape = 'u8[16384]{0}', space=vmem, size = 0x4000, scoped, tag = 'input window, operand 3, single buffered']
    #allocation8 [shape = 'u8[8192]{0}', space=vmem, size = 0x2000, scoped, tag = 'output window, operand 0']
    #allocation9 [shape = 'u8[8192]{0}', space=vmem, size = 0x2000, scoped, tag = 'output window, operand 1']
    #allocation10 [shape = 's32[2]{0}', space=sflag, size = 0x8, scoped, tag = 'scoped memory for tpu_custom_call.1']
    #allocation11 [shape = 'u8[8192]{0}', space=vmem, size = 0x2000, scoped, tag = 'output window, operand 2']
    %13 = vsyncpa [#allocation3], 0
    %s14 = scalar_lea.sflag [#allocation3], 1
    %15 = vsyncpa %s14, 0
    %16 = vsyncpa [#allocation6], 0
    %17 = vsyncpa [#allocation4], 0
    %s18 = scalar_lea.sflag [#allocation4], 1
    %19 = vsyncpa %s18, 0
    %20 = vsyncpa [#allocation10], 0
    %s21 = scalar_lea.sflag [#allocation10], 1
    %22 = vsyncpa %s21, 0
    loop: start=0, step=1, limit=4
    $region2: #{tpu_custom_call.1} parent=1 // loop_pre_header
      _
    $region3: #{tpu_custom_call.1} parent=1 // loop_header
      %s24 = sphi 0, %s28
      %p25 = scmp.ge.s32.totalorder %s24, 4
      %s31 = sphi 0, %s43
      %s32 = sphi 0, %s39
      %s33 = sphi 0, %s31
      %s34 = sphi 0, %s32
      %s35 = sphi 0, %s33
      %s36 = sphi 0, %s34
      %s48 = sphi 0, %s50
      %s51 = sphi 0, %s48
      %s52 = sphi 0, %s51
      %s68 = sphi 0, %s52
      %s72 = sphi 0, %s72
      %s74 = sphi 0, %s72
      %s75 = sphi 0, %s74
      %s89 = sphi 0, %s75
      %s93 = sphi 0, %s93
      %s95 = sphi 0, %s93
      %s96 = sphi 0, %s95
      %s110 = sphi 0, %s96
      %s114 = sphi 0, %s114
      %s116 = sphi 0, %s114
      %s117 = sphi 0, %s116
      %s131 = sphi 0, %s117
      %s135 = sphi 0, %s135
      %s137 = sphi 0, %s135
      %s138 = sphi 0, %s137
      %s152 = sphi 0, %s138
      %s160 = sphi 0, %s162
      %s163 = sphi 0, %s160
      %s164 = sphi 0, %s163
      %s180 = sphi 0, %s164
      %s188 = sphi 0, %s190
      %s191 = sphi 0, %s188
      %s192 = sphi 0, %s191
      %s208 = sphi 0, %s192
      %s216 = sphi 0, %s218
      %s219 = sphi 0, %s216
      %s220 = sphi 0, %s219
      %s236 = sphi 0, %s220
    $region4: #{tpu_custom_call.1} parent=1 // loop_header_branch
      %27 = sbr.rel (%p25) target = $region8
    $region5: #{tpu_custom_call.1} parent=1 // loop_body
      %s29 = ssub.s32 %s24, 1
      %s30 = ssub.s32 %s24, 2
      %s37 = sadd.s32 1, %s32
      %p38 = scmp.ge.s32.totalorder %s37, 1
      %s39 = scalar_select %p38, 0, %s37
      %s40 = sadd.s32 1, %s31
      %s41 = scalar_select %p38, %s40, %s31
      %p42 = scmp.ge.s32.totalorder %s41, 2
      %s43 = scalar_select %p42, 0, %s41
      %s44 = ssub.s32 %s31, %s43
      %s45 = ssub.s32 %s32, %s39
      %s46 = sor.u32 %s44, %s45
      %p47 = scmp.eq.s32.totalorder %s46, 0
      %s49 = sadd.s32 %s48, 1
      %s50 = scalar_select %p47, %s48, %s49
      %p53 = pneg %p47
      %p54 = scmp.eq.s32.totalorder %s24, 1
      %p55 = por %p53, %p54
      %p56 = scmp.ne.s32.totalorder %s48, %s51
      %p57 = scmp.eq.s32.totalorder %s24, 0
      %p58 = por %p56, %p57
      %p59 = scmp.ne.s32.totalorder %s48, %s51
      %p60 = scmp.eq.s32.totalorder %s29, 1
      %p61 = por %p59, %p60
      %p62 = scmp.ne.s32.totalorder %s51, %s52
      %p63 = scmp.eq.s32.totalorder %s29, 0
      %p64 = por %p62, %p63
      %p65 = scmp.ne.s32.totalorder %s51, %s52
      %p66 = scmp.eq.s32.totalorder %s30, 1
      %p67 = por %p65, %p66
      %p69 = scmp.ne.s32.totalorder %s52, %s68
      %p70 = scmp.eq.s32.totalorder %s30, 0
      %p71 = por %p69, %p70
      %s73 = sadd.s32 %s72, 1
      %p76 = scmp.eq.s32.totalorder %s24, 1
      %p77 = scmp.ne.s32.totalorder %s72, %s74
      %p78 = scmp.eq.s32.totalorder %s24, 0
      %p79 = por %p77, %p78
      %p80 = scmp.ne.s32.totalorder %s72, %s74
      %p81 = scmp.eq.s32.totalorder %s29, 1
      %p82 = por %p80, %p81
      %p83 = scmp.ne.s32.totalorder %s74, %s75
      %p84 = scmp.eq.s32.totalorder %s29, 0
      %p85 = por %p83, %p84
      %p86 = scmp.ne.s32.totalorder %s74, %s75
      %p87 = scmp.eq.s32.totalorder %s30, 1
      %p88 = por %p86, %p87
      %p90 = scmp.ne.s32.totalorder %s75, %s89
      %p91 = scmp.eq.s32.totalorder %s30, 0
      %p92 = por %p90, %p91
      %s94 = sadd.s32 %s93, 1
      %p97 = scmp.eq.s32.totalorder %s24, 1
      %p98 = scmp.ne.s32.totalorder %s93, %s95
      %p99 = scmp.eq.s32.totalorder %s24, 0
      %p100 = por %p98, %p99
      %p101 = scmp.ne.s32.totalorder %s93, %s95
      %p102 = scmp.eq.s32.totalorder %s29, 1
      %p103 = por %p101, %p102
      %p104 = scmp.ne.s32.totalorder %s95, %s96
      %p105 = scmp.eq.s32.totalorder %s29, 0
      %p106 = por %p104, %p105
      %p107 = scmp.ne.s32.totalorder %s95, %s96
      %p108 = scmp.eq.s32.totalorder %s30, 1
      %p109 = por %p107, %p108
      %p111 = scmp.ne.s32.totalorder %s96, %s110
      %p112 = scmp.eq.s32.totalorder %s30, 0
      %p113 = por %p111, %p112
      %s115 = sadd.s32 %s114, 1
      %p118 = scmp.eq.s32.totalorder %s24, 1
      %p119 = scmp.ne.s32.totalorder %s114, %s116
      %p120 = scmp.eq.s32.totalorder %s24, 0
      %p121 = por %p119, %p120
      %p122 = scmp.ne.s32.totalorder %s114, %s116
      %p123 = scmp.eq.s32.totalorder %s29, 1
      %p124 = por %p122, %p123
      %p125 = scmp.ne.s32.totalorder %s116, %s117
      %p126 = scmp.eq.s32.totalorder %s29, 0
      %p127 = por %p125, %p126
      %p128 = scmp.ne.s32.totalorder %s116, %s117
      %p129 = scmp.eq.s32.totalorder %s30, 1
      %p130 = por %p128, %p129
      %p132 = scmp.ne.s32.totalorder %s117, %s131
      %p133 = scmp.eq.s32.totalorder %s30, 0
      %p134 = por %p132, %p133
      %s136 = sadd.s32 %s135, 1
      %p139 = scmp.eq.s32.totalorder %s24, 1
      %p140 = scmp.ne.s32.totalorder %s135, %s137
      %p141 = scmp.eq.s32.totalorder %s24, 0
      %p142 = por %p140, %p141
      %p143 = scmp.ne.s32.totalorder %s135, %s137
      %p144 = scmp.eq.s32.totalorder %s29, 1
      %p145 = por %p143, %p144
      %p146 = scmp.ne.s32.totalorder %s137, %s138
      %p147 = scmp.eq.s32.totalorder %s29, 0
      %p148 = por %p146, %p147
      %p149 = scmp.ne.s32.totalorder %s137, %s138
      %p150 = scmp.eq.s32.totalorder %s30, 1
      %p151 = por %p149, %p150
      %p153 = scmp.ne.s32.totalorder %s138, %s152
      %p154 = scmp.eq.s32.totalorder %s30, 0
      %p155 = por %p153, %p154
      %s156 = ssub.s32 %s31, %s43
      %s157 = ssub.s32 %s32, %s39
      %s158 = sor.u32 %s156, %s157
      %p159 = scmp.eq.s32.totalorder %s158, 0
      %s161 = sadd.s32 %s160, 1
      %s162 = scalar_select %p159, %s160, %s161
      %p165 = pneg %p159
      %p166 = scmp.eq.s32.totalorder %s24, 1
      %p167 = por %p165, %p166
      %p168 = scmp.ne.s32.totalorder %s160, %s163
      %p169 = scmp.eq.s32.totalorder %s24, 0
      %p170 = por %p168, %p169
      %p171 = scmp.ne.s32.totalorder %s160, %s163
      %p172 = scmp.eq.s32.totalorder %s29, 1
      %p173 = por %p171, %p172
      %p174 = scmp.ne.s32.totalorder %s163, %s164
      %p175 = scmp.eq.s32.totalorder %s29, 0
      %p176 = por %p174, %p175
      %p177 = scmp.ne.s32.totalorder %s163, %s164
      %p178 = scmp.eq.s32.totalorder %s30, 1
      %p179 = por %p177, %p178
      %p181 = scmp.ne.s32.totalorder %s164, %s180
      %p182 = scmp.eq.s32.totalorder %s30, 0
      %p183 = por %p181, %p182
      %s184 = ssub.s32 %s31, %s43
      %s185 = ssub.s32 %s32, %s39
      %s186 = sor.u32 %s184, %s185
      %p187 = scmp.eq.s32.totalorder %s186, 0
      %s189 = sadd.s32 %s188, 1
      %s190 = scalar_select %p187, %s188, %s189
      %p193 = pneg %p187
      %p194 = scmp.eq.s32.totalorder %s24, 1
      %p195 = por %p193, %p194
      %p196 = scmp.ne.s32.totalorder %s188, %s191
      %p197 = scmp.eq.s32.totalorder %s24, 0
      %p198 = por %p196, %p197
      %p199 = scmp.ne.s32.totalorder %s188, %s191
      %p200 = scmp.eq.s32.totalorder %s29, 1
      %p201 = por %p199, %p200
      %p202 = scmp.ne.s32.totalorder %s191, %s192
      %p203 = scmp.eq.s32.totalorder %s29, 0
      %p204 = por %p202, %p203
      %p205 = scmp.ne.s32.totalorder %s191, %s192
      %p206 = scmp.eq.s32.totalorder %s30, 1
      %p207 = por %p205, %p206
      %p209 = scmp.ne.s32.totalorder %s192, %s208
      %p210 = scmp.eq.s32.totalorder %s30, 0
      %p211 = por %p209, %p210
      %s212 = ssub.s32 %s31, %s43
      %s213 = ssub.s32 %s32, %s39
      %s214 = sor.u32 %s212, %s213
      %p215 = scmp.eq.s32.totalorder %s214, 0
      %s217 = sadd.s32 %s216, 1
      %s218 = scalar_select %p215, %s216, %s217
      %p221 = pneg %p215
      %p222 = scmp.eq.s32.totalorder %s24, 1
      %p223 = por %p221, %p222
      %p224 = scmp.ne.s32.totalorder %s216, %s219
      %p225 = scmp.eq.s32.totalorder %s24, 0
      %p226 = por %p224, %p225
      %p227 = scmp.ne.s32.totalorder %s216, %s219
      %p228 = scmp.eq.s32.totalorder %s29, 1
      %p229 = por %p227, %p228
      %p230 = scmp.ne.s32.totalorder %s219, %s220
      %p231 = scmp.eq.s32.totalorder %s29, 0
      %p232 = por %p230, %p231
      %p233 = scmp.ne.s32.totalorder %s219, %s220
      %p234 = scmp.eq.s32.totalorder %s30, 1
      %p235 = por %p233, %p234
      %p237 = scmp.ne.s32.totalorder %s220, %s236
      %p238 = scmp.eq.s32.totalorder %s30, 0
      %p239 = por %p237, %p238
      %p240 = scmp.le.s32.totalorder 1, %s24
      %p241 = scmp.lt.s32.totalorder %s24, 3
      %p242 = pnand %p240, %p241
      %p243 = pneg %p242
      // Predicated region
      $region9: #{tpu_custom_call.1} parent=5 // pred_check
        _
      $region10: #{tpu_custom_call.1} parent=5 // pred_check_branch
        %245 = sbr.rel (%p242) target = $region12
      $region11: #{tpu_custom_call.1} parent=5 // pred_region
        %s246 = ssub.s32 %s24, 1
        // Predicated region
        $region13: #{tpu_custom_call.1} parent=11 // pred_check
          %p247 = pneg %p85
        $region14: #{tpu_custom_call.1} parent=11 // pred_check_branch
          %249 = sbr.rel (%p247) target = $region16
        $region15: #{tpu_custom_call.1} parent=11 // pred_region
          %251 = vsyncadd [#allocation6], 0
          %s253 = sshll.u32 %s1, 4
          %s254 = int_to_ptr.hbm [resolvable:$true] %s253
          %s255 = sshll.u32 [#allocation5], 4
          %s256 = int_to_ptr.vmem [resolvable:$true] %s255
          %258 = dma.hbm_to_vmem [thread:$0]  %s254, 16, %s256, [#allocation6]
        $region16: #{tpu_custom_call.1} parent=11 // pred_fallthru
          _
        // Predicated region
        $region17: #{tpu_custom_call.1} parent=11 // pred_check
          %p259 = pneg %p106
        $region18: #{tpu_custom_call.1} parent=11 // pred_check_branch
          %261 = sbr.rel (%p259) target = $region20
        $region19: #{tpu_custom_call.1} parent=11 // pred_region
          _
        $region20: #{tpu_custom_call.1} parent=11 // pred_fallthru
          _
        // Predicated region
        $region21: #{tpu_custom_call.1} parent=11 // pred_check
          %p262 = pneg %p127
        $region22: #{tpu_custom_call.1} parent=11 // pred_check_branch
          %264 = sbr.rel (%p262) target = $region24
        $region23: #{tpu_custom_call.1} parent=11 // pred_region
          %266 = vsyncadd [#allocation6], 0
          %s267 = sshll.u32 %s3, 4
          %s268 = int_to_ptr.hbm [resolvable:$true] %s267
          %s269 = sshll.u32 [#allocation7], 4
          %s270 = int_to_ptr.vmem [resolvable:$true] %s269
          %275 = dma.hbm_to_vmem [thread:$0]  %s268, 512, %s270, [#allocation6], 128, 128, 8
        $region24: #{tpu_custom_call.1} parent=11 // pred_fallthru
          _
        // Predicated region
        $region25: #{tpu_custom_call.1} parent=11 // pred_check
          %p276 = pneg %p148
        $region26: #{tpu_custom_call.1} parent=11 // pred_check_branch
          %278 = sbr.rel (%p276) target = $region28
        $region27: #{tpu_custom_call.1} parent=11 // pred_region
          _
        $region28: #{tpu_custom_call.1} parent=11 // pred_fallthru
          _
      $region12: #{tpu_custom_call.1} parent=5 // pred_fallthru
        _
      %p279 = scmp.lt.s32.totalorder %s24, 2
      // Predicated region
      $region29: #{tpu_custom_call.1} parent=5 // pred_check
        %p280 = pneg %p279
      $region30: #{tpu_custom_call.1} parent=5 // pred_check_branch
        %282 = sbr.rel (%p280) target = $region32
      $region31: #{tpu_custom_call.1} parent=5 // pred_region
        // Predicated region
        $region33: #{tpu_custom_call.1} parent=31 // pred_check
          %p283 = pneg %p58
        $region34: #{tpu_custom_call.1} parent=31 // pred_check_branch
          %285 = sbr.rel (%p283) target = $region36
        $region35: #{tpu_custom_call.1} parent=31 // pred_region
          %s286 = sand.u32 %s48, 1
          %s287 = scalar_lea.sflag [#allocation3], %s286
          %s288 = sand.u32 %s48, 1
          %s289 = smul.addr %s288, 8
          %s290 = scalar_lea.vmem [#allocation2], %s289
          %292 = vsyncadd %s287, 0
          %s293 = sadd.s32 %s32, %s31
          %s294 = smul.addr %s293, 8
          %s295 = scalar_lea.hbm %s0, %s294
          %s297 = sshll.u32 %s295, 4
          %s298 = int_to_ptr.hbm [resolvable:$true] %s297
          %s299 = sshll.u32 %s290, 4
          %s300 = int_to_ptr.vmem [resolvable:$true] %s299
          %302 = dma.hbm_to_vmem [thread:$0]  %s298, 128, %s300, %s287
        $region36: #{tpu_custom_call.1} parent=31 // pred_fallthru
          _
      $region32: #{tpu_custom_call.1} parent=5 // pred_fallthru
        _
      %p303 = scmp.le.s32.totalorder 1, %s24
      %p304 = scmp.lt.s32.totalorder %s24, 3
      %p305 = pnand %p303, %p304
      %p306 = pneg %p305
      // Predicated region
      $region37: #{tpu_custom_call.1} parent=5 // pred_check
        _
      $region38: #{tpu_custom_call.1} parent=5 // pred_check_branch
        %308 = sbr.rel (%p305) target = $region40
      $region39: #{tpu_custom_call.1} parent=5 // pred_region
        %s309 = ssub.s32 %s24, 1
        %s310 = sand.u32 %s51, 1
        %s311 = scalar_lea.sflag [#allocation3], %s310
        %s312 = sand.u32 %s51, 1
        %s313 = smul.addr %s312, 8
        %s314 = scalar_lea.vmem [#allocation2], %s313
        // Predicated region
        $region41: #{tpu_custom_call.1} parent=39 // pred_check
          %p315 = pneg %p64
        $region42: #{tpu_custom_call.1} parent=39 // pred_check_branch
          %317 = sbr.rel (%p315) target = $region44
        $region43: #{tpu_custom_call.1} parent=39 // pred_region
          %319 = dma.done %s311, 128
        $region44: #{tpu_custom_call.1} parent=39 // pred_fallthru
          _
        // Predicated region
        $region45: #{tpu_custom_call.1} parent=39 // pred_check
          %p320 = pneg %p85
        $region46: #{tpu_custom_call.1} parent=39 // pred_check_branch
          %322 = sbr.rel (%p320) target = $region48
        $region47: #{tpu_custom_call.1} parent=39 // pred_region
          %324 = dma.done [#allocation6], 16
        $region48: #{tpu_custom_call.1} parent=39 // pred_fallthru
          _
        // Predicated region
        $region49: #{tpu_custom_call.1} parent=39 // pred_check
          %p325 = pneg %p127
        $region50: #{tpu_custom_call.1} parent=39 // pred_check_branch
          %327 = sbr.rel (%p325) target = $region52
        $region51: #{tpu_custom_call.1} parent=39 // pred_region
          %329 = dma.done [#allocation6], 512
        $region52: #{tpu_custom_call.1} parent=39 // pred_fallthru
          _
        %s330 = sand.u32 %s51, 1
        %s331 = scalar_lea.sflag [#allocation3], %s330
        %s332 = sand.u32 %s51, 1
        %s333 = smul.addr %s332, 8
        %s334 = scalar_lea.vmem [#allocation2], %s333
        %p335 = pneg %p64
        %p336 = pneg %p61
        %p337 = pneg %p85
        %p338 = pneg %p82
        %p339 = pneg %p106
        %p340 = pneg %p103
        %p341 = pneg %p127
        %p342 = pneg %p124
        %p343 = pneg %p148
        %p344 = pneg %p145
        %p345 = pneg %p176
        %p346 = pneg %p173
        %s347 = sand.u32 %s163, 1
        %s348 = scalar_lea.sflag [#allocation4], %s347
        %s349 = sand.u32 %s163, 1
        %s350 = smul.addr %s349, 8
        %s351 = scalar_lea.vmem [#allocation8], %s350
        %p352 = pneg %p204
        %p353 = pneg %p201
        %s354 = sand.u32 %s29, 1
        %s355 = scalar_lea.sflag [#allocation10], %s354
        %s356 = sand.u32 %s191, 1
        %s357 = smul.addr %s356, 8
        %s358 = scalar_lea.vmem [#allocation9], %s357
        %p359 = pneg %p232
        %p360 = pneg %p229
        %s361 = sand.u32 %s29, 1
        %s362 = scalar_lea.sflag [#allocation10], %s361
        %s363 = sand.u32 %s219, 1
        %s364 = smul.addr %s363, 8
        %s365 = scalar_lea.vmem [#allocation11], %s364
        %v366 = vld [vmem:[%s314] sm:$0xff]
        %v367 = vld [vmem:[#allocation5] sm:$0x1]
        %v368 = vld [vmem:[%s2] sm:$0x1]
        %vm369 = vcmask 261120
        %v370 = vsel %vm369, %v366, 0.0
        %371 = vadd.xlane.f32.xlu0 %v370
        %v372 = vpop.xlane.xlu0 %371
        %v373 = vrcp.pop 32.0
        %v374 = vmul.f32 32.0, %v373
        %v375 = vsub.f32 1.0, %v374
        %v376 = vmul.f32 %v373, %v375
        %v377 = vadd.f32 %v373, %v376
        %vm378 = vweird.f32 %v373
        %v379 = vsel %vm378, %v373, %v377
        %v380 = vmul.f32 %v372, %v379
        %v381 = vsub.f32 %v366, %v380
        %v382 = vmul.f32 %v381, %v381
        %v383 = vsel %vm369, %v382, 0.0
        %384 = vadd.xlane.f32.xlu0 %v383
        %v385 = vpop.xlane.xlu0 %384
        %v386 = vmul.f32 %v385, %v379
        %v387 = vadd.f32 %v386, 1e-06
        %v388 = vrsqrt.pop %v387
        %v389 = vmul.f32 %v388, %v387
        %v390 = vmul.f32 %v389, %v388
        %v391 = vmul.f32 0.5, %v390
        %v392 = vsub.f32 1.5, %v391
        %v393 = vmul.f32 %v388, %v392
        %vm394 = vweird.f32 %v387
        %vm395 = vweird.f32 %v388
        %vm396 = vmor %vm394, %vm395
        %v397 = vsel %vm396, %v388, %v393
        %v398 = vmul.f32 %v381, %v397
        %v400 = vperm.slane %v367, 0
        %v402 = vmul.f32 %v398, %v400
        %v404 = vperm.slane %v368, 0
        %v406 = vadd.f32 %v402, %v404
        %v407 = vld [vmem:[#allocation7] sm:$0xff]
        %v408 = vld [vmem:[#allocation7 + $0x8] sm:$0xff]
        %v409 = vld [vmem:[#allocation7 + $0x10] sm:$0xff]
        %v410 = vld [vmem:[#allocation7 + $0x18] sm:$0xff]
        %v411 = vld [vmem:[%s4] sm:$0x1]
        %v413 = vperm.slane %v411, 0
        %v416 = vsel %vm369, %v406, 0
        %418 = vmatpush.msra.mxu0 0.0
        %419 = vmatpush.msra.mxu0 0.0
        %420 = vmatpush.msra.mxu0 0.0
        %421 = vmatpush.msra.mxu0 0.0
        %422 = vmatpush.msra.mxu0 0.0
        %423 = vmatpush.msra.mxu0 0.0
        %424 = vmatpush.msra.mxu0 0.0
        %425 = vmatpush.msra.mxu0 0.0
        %426 = vmatpush.msra.mxu0 0.0
        %427 = vmatpush.msra.mxu0 0.0
        %428 = vmatpush.msra.mxu0 0.0
        %429 = vmatpush.msra.mxu0 0.0
        %430 = vmatpush.msra.mxu0 %v410
        %431 = vmatpush.msra.mxu0 %v409
        %432 = vmatpush.msra.mxu0 %v408
        %433 = vmatpush.msra.mxu0 %v407
        %434 = vmatmul.f32.gmra.mxu0 %v416
        %v435 = vpop.f32.mrf.mxu0
        %v436 = vadd.f32 %v413, %v435
        %437 = vdwg.mxu0
        %438 = vst.msk [vmem:[%s351] sm:$0xff] %vm369, %v436
        %440 = vrot.lane.b32.xlu0 %v436, 96
        %v441 = vpop.permute.xlu0 %440
        %443 = vst.msk [vmem:[%s358] sm:$0xff] %vm369, %v441
        %444 = vrot.lane.b32.xlu0 %v436, 64
        %v445 = vpop.permute.xlu0 %444
        %447 = vst.msk [vmem:[%s365] sm:$0xff] %vm369, %v445
        %s448 = sand.u32 %s163, 1
        %s449 = scalar_lea.sflag [#allocation4], %s448
        %s450 = sand.u32 %s163, 1
        %s451 = smul.addr %s450, 8
        %s452 = scalar_lea.vmem [#allocation8], %s451
        %s453 = sand.u32 %s29, 1
        %s454 = scalar_lea.sflag [#allocation10], %s453
        %s455 = sand.u32 %s191, 1
        %s456 = smul.addr %s455, 8
        %s457 = scalar_lea.vmem [#allocation9], %s456
        %s458 = sand.u32 %s29, 1
        %s459 = scalar_lea.sflag [#allocation10], %s458
        %s460 = sand.u32 %s219, 1
        %s461 = smul.addr %s460, 8
        %s462 = scalar_lea.vmem [#allocation11], %s461
        // Predicated region
        $region53: #{tpu_custom_call.1} parent=39 // pred_check
          %p463 = pneg %p173
        $region54: #{tpu_custom_call.1} parent=39 // pred_check_branch
          %465 = sbr.rel (%p463) target = $region56
        $region55: #{tpu_custom_call.1} parent=39 // pred_region
          %467 = vsyncadd %s449, 0
          %s468 = sadd.s32 %s34, %s33
          %s469 = smul.addr %s468, 8
          %s470 = scalar_lea.hbm %s5, %s469
          %s472 = sshll.u32 %s452, 4
          %s473 = int_to_ptr.vmem [resolvable:$true] %s472
          %s474 = sshll.u32 %s470, 4
          %s475 = int_to_ptr.hbm [resolvable:$true] %s474
          %477 = dma.vmem_to_hbm [thread:$0]  %s473, 128, %s475, %s449
        $region56: #{tpu_custom_call.1} parent=39 // pred_fallthru
          _
        // Predicated region
        $region57: #{tpu_custom_call.1} parent=39 // pred_check
          %p478 = pneg %p201
        $region58: #{tpu_custom_call.1} parent=39 // pred_check_branch
          %480 = sbr.rel (%p478) target = $region60
        $region59: #{tpu_custom_call.1} parent=39 // pred_region
          %482 = vsyncadd %s454, 0
          %s483 = sadd.s32 %s34, %s33
          %s484 = smul.addr %s483, 8
          %s485 = scalar_lea.hbm %s6, %s484
          %s487 = sshll.u32 %s457, 4
          %s488 = int_to_ptr.vmem [resolvable:$true] %s487
          %s489 = sshll.u32 %s485, 4
          %s490 = int_to_ptr.hbm [resolvable:$true] %s489
          %492 = dma.vmem_to_hbm [thread:$0]  %s488, 128, %s490, %s454
        $region60: #{tpu_custom_call.1} parent=39 // pred_fallthru
          _
        // Predicated region
        $region61: #{tpu_custom_call.1} parent=39 // pred_check
          %p493 = pneg %p229
        $region62: #{tpu_custom_call.1} parent=39 // pred_check_branch
          %495 = sbr.rel (%p493) target = $region64
        $region63: #{tpu_custom_call.1} parent=39 // pred_region
          %497 = vsyncadd %s459, 0
          %s498 = sadd.s32 %s34, %s33
          %s499 = smul.addr %s498, 8
          %s500 = scalar_lea.hbm %s7, %s499
          %s502 = sshll.u32 %s462, 4
          %s503 = int_to_ptr.vmem [resolvable:$true] %s502
          %s504 = sshll.u32 %s500, 4
          %s505 = int_to_ptr.hbm [resolvable:$true] %s504
          %507 = dma.vmem_to_hbm [thread:$0]  %s503, 128, %s505, %s459
        $region64: #{tpu_custom_call.1} parent=39 // pred_fallthru
          _
      $region40: #{tpu_custom_call.1} parent=5 // pred_fallthru
        _
      %p508 = scmp.le.s32.totalorder 2, %s24
      // Predicated region
      $region65: #{tpu_custom_call.1} parent=5 // pred_check
        %p509 = pneg %p508
      $region66: #{tpu_custom_call.1} parent=5 // pred_check_branch
        %511 = sbr.rel (%p509) target = $region68
      $region67: #{tpu_custom_call.1} parent=5 // pred_region
        %s512 = ssub.s32 %s24, 2
        // Predicated region
        $region69: #{tpu_custom_call.1} parent=67 // pred_check
          %p513 = pneg %p179
        $region70: #{tpu_custom_call.1} parent=67 // pred_check_branch
          %515 = sbr.rel (%p513) target = $region72
        $region71: #{tpu_custom_call.1} parent=67 // pred_region
          %s516 = sand.u32 %s164, 1
          %s517 = scalar_lea.sflag [#allocation4], %s516
          %s518 = sand.u32 %s164, 1
          %s519 = smul.addr %s518, 8
          %s520 = scalar_lea.vmem [#allocation8], %s519
          %522 = dma.done %s517, 128
        $region72: #{tpu_custom_call.1} parent=67 // pred_fallthru
          _
        // Predicated region
        $region73: #{tpu_custom_call.1} parent=67 // pred_check
          %p523 = pneg %p207
        $region74: #{tpu_custom_call.1} parent=67 // pred_check_branch
          %525 = sbr.rel (%p523) target = $region76
        $region75: #{tpu_custom_call.1} parent=67 // pred_region
          %s526 = sand.u32 %s30, 1
          %s527 = scalar_lea.sflag [#allocation10], %s526
          %s528 = sand.u32 %s192, 1
          %s529 = smul.addr %s528, 8
          %s530 = scalar_lea.vmem [#allocation9], %s529
          %532 = dma.done %s527, 128
        $region76: #{tpu_custom_call.1} parent=67 // pred_fallthru
          _
        // Predicated region
        $region77: #{tpu_custom_call.1} parent=67 // pred_check
          %p533 = pneg %p235
        $region78: #{tpu_custom_call.1} parent=67 // pred_check_branch
          %535 = sbr.rel (%p533) target = $region80
        $region79: #{tpu_custom_call.1} parent=67 // pred_region
          %s536 = sand.u32 %s30, 1
          %s537 = scalar_lea.sflag [#allocation10], %s536
          %s538 = sand.u32 %s220, 1
          %s539 = smul.addr %s538, 8
          %s540 = scalar_lea.vmem [#allocation11], %s539
          %542 = dma.done %s537, 128
        $region80: #{tpu_custom_call.1} parent=67 // pred_fallthru
          _
      $region68: #{tpu_custom_call.1} parent=5 // pred_fallthru
        _
    $region6: #{tpu_custom_call.1} parent=1 // loop_footer
      %s28 = sadd.s32 1, %s24
    $region7: #{tpu_custom_call.1} parent=1 // loop_footer_branch
      %23 = sbr.rel target = $region3
    $region8: #{tpu_custom_call.1} parent=1 // loop_exit
      _
    %543 = vsyncpa [#allocation3], 1
    %s544 = scalar_lea.sflag [#allocation3], 1
    %545 = vsyncpa %s544, 1
    %546 = vsyncpa [#allocation6], 1
    %547 = vsyncpa [#allocation4], 1
    %s548 = scalar_lea.sflag [#allocation4], 1
    %549 = vsyncpa %s548, 1
    %550 = vsyncpa [#allocation10], 1
    %s551 = scalar_lea.sflag [#allocation10], 1
    %552 = vsyncpa %s551, 1

</llo_original>
